<compile_context>
chip_gen: v5e
topology: v5e:2x2
jax: 0.10.0
libtpu: 0.0.40
codegen_flags: <defaults>
</compile_context>

<pallas_src>
import jax
import jax.numpy as jnp
from jax.experimental import pallas as pl
from jax.experimental.pallas import tpu as pltpu

_LANES = 128
_SUBLANES = 8
_TILE = _SUBLANES * _LANES          # 1024-element alignment of the main slab
_MAX_BLOCK_ROWS = 2048              # (2048, 128) f32 = 1 MiB per operand block
_ALPHA = 1e-07


def _num_tensorcores():
    """TensorCores addressable by one kernel via the megacore 'parallel' split."""
    try:
        kind = jax.devices()[0].device_kind.lower()
    except Exception:
        return 1
    # Single-TC JAX devices: v5e ("... lite"), v6e, and v2/v3 (1 TC per device).
    if "lite" in kind or "v5e" in kind or "v6e" in kind or "v6" in kind:
        return 1
    if "v2" in kind or "v3" in kind:
        return 1
    # Dual-TensorCore ("megacore") chips: v4, v5p, TPU7x.
    if "v4" in kind or "v5p" in kind or "v5" in kind or "v7" in kind or "7x" in kind:
        return 2
    return 1


def _make_silog_kernel(with_mask, block_rows, rows, blocks_per_core, guard):
    nstrips = block_rows // _SUBLANES
    unroll = min(nstrips, 8)

    def kernel(*refs):
        if with_mask:
            x_ref, t_ref, m_ref, acc_ref = refs
        else:
            x_ref, t_ref, acc_ref = refs

        i = pl.program_id(1)

        @pl.when(i == 0)
        def _init():
            acc_ref[...] = jnp.zeros_like(acc_ref)

        def accumulate(rem):
            # rem is None   -> every row of the block is valid (fast path)
            # rem is scalar -> only rows [0, rem) are valid (tail / phantom)
            def strip(s, carry):
                s1, s2, cnt = carry
                r0 = pl.multiple_of(s * _SUBLANES, _SUBLANES)
                x = x_ref[pl.ds(r0, _SUBLANES), :].astype(jnp.float32)
                t = t_ref[pl.ds(r0, _SUBLANES), :].astype(jnp.float32)
                # Two-log form: an f32 divide is EUP-reciprocal + VALU Newton
                # steps, so it would not save an EUP op anyway.
                g = jnp.log(x + _ALPHA) - jnp.log(t + _ALPHA)

                keep = None
                if with_mask:
                    keep = m_ref[pl.ds(r0, _SUBLANES), :].astype(jnp.float32) != 0.0
                if rem is not None:
                    row = jax.lax.broadcasted_iota(
                        jnp.int32, (_SUBLANES, _LANES), 0) + r0
                    valid = row < rem
                    keep = valid if keep is None else jnp.logical_and(keep, valid)
                if keep is not None:
                    # Single select on g after the log; NaN/Inf produced by
                    # masked / out-of-range elements is discarded here.
                    g = jnp.where(keep, g, 0.0)
                if with_mask:
                    cnt = cnt + keep.astype(jnp.float32)

                return (s1 + g, s2 + g * g, cnt)

            zeros = jnp.zeros((_SUBLANES, _LANES), jnp.float32)
            s1, s2, cnt = jax.lax.fori_loop(
                0, nstrips, strip, (zeros, zeros, zeros), unroll=unroll)
            acc_ref[0, 0] += s1
            acc_ref[0, 1] += s2
            if with_mask:
                acc_ref[0, 2] += cnt

        if guard:
            blk = pl.program_id(0) * blocks_per_core + i
            rem = rows - blk * block_rows      # valid rows (may be <= 0: phantom)

            @pl.when(rem >= block_rows)        # full block: no masking at all
            def _full():
                accumulate(None)

            @pl.when(rem < block_rows)         # tail / phantom block
            def _partial():
                accumulate(rem)
        else:
            accumulate(None)

    return kernel


def _jax_partial_sums(x, t, m):
    """Plain-JAX partial sums (s1, s2, count|None) for a small unaligned tail."""
    x = x.astype(jnp.float32)
    t = t.astype(jnp.float32)
    g = jnp.log(x + _ALPHA) - jnp.log(t + _ALPHA)
    cnt = None
    if m is not None:
        keep = m != 0
        g = jnp.where(keep, g, 0.0)
        cnt = jnp.sum(keep.astype(jnp.float32))
    return jnp.sum(g), jnp.sum(g * g), cnt


def silog_loss(inp, target, mask=None, beta=0.15):
    """Pallas TPU implementation of SILogLoss.forward.

    Inputs stream in their native dtype (pass bf16 activations directly —
    the kernel upcasts to f32 internally)."""
    if inp.ndim == 3:
        inp = inp[:, None]
    if target.ndim == 3:
        target = target[:, None]
    if target.shape != inp.shape:
        # TODO(synk): for C > 1 this materializes a full copy; replicate via
        # the BlockSpec index_map instead if it ever matters.
        target = jnp.broadcast_to(target, inp.shape)

    with_mask = mask is not None
    if with_mask:
        if mask.ndim == 3:
            mask = mask[:, None]
        if mask.shape != inp.shape:
            mask = jnp.broadcast_to(mask, inp.shape)
        if mask.dtype == jnp.bool_:
            # TODO(synk): stream bool refs directly once universally supported;
            # int8 keeps the 1-byte width and is a known-good Mosaic dtype.
            mask = mask.astype(jnp.int8)

    n = int(inp.size)
    x_flat = inp.reshape(-1)
    t_flat = target.reshape(-1)
    m_flat = mask.reshape(-1) if with_mask else None

    # Stream only the 1024-aligned prefix through the kernel; fold the
    # (< 1024-element) tail with plain JAX instead of padding the whole tensor.
    n_main = (n // _TILE) * _TILE

    s1_t = jnp.float32(0.0)
    s2_t = jnp.float32(0.0)
    cnt_t = jnp.float32(0.0)
    if n_main != n:
        ts1, ts2, tcnt = _jax_partial_sums(
            x_flat[n_main:], t_flat[n_main:],
            m_flat[n_main:] if with_mask else None)
        s1_t, s2_t = ts1, ts2
        if with_mask:
            cnt_t = tcnt

    if n_main == 0:
        s1, s2 = s1_t, s2_t
        count = cnt_t if with_mask else jnp.float32(n)
    else:
        rows = n_main // _LANES                       # always a multiple of 8
        if n_main == n:
            x2 = x_flat.reshape(rows, _LANES)
            t2 = t_flat.reshape(rows, _LANES)
            m2 = m_flat.reshape(rows, _LANES) if with_mask else None
        else:
            x2 = x_flat[:n_main].reshape(rows, _LANES)
            t2 = t_flat[:n_main].reshape(rows, _LANES)
            m2 = m_flat[:n_main].reshape(rows, _LANES) if with_mask else None

        block_rows = min(_MAX_BLOCK_ROWS, rows)       # multiple of 8
        nblocks = -(-rows // block_rows)
        ncores = min(_num_tensorcores(), nblocks)
        blocks_per_core = -(-nblocks // ncores)
        covered = ncores * blocks_per_core
        guard = (covered * block_rows) != rows        # partial / phantom block?
        clamp = covered > nblocks                     # phantom blocks exist?
        nq = 3 if with_mask else 2

        def in_index_map(c, i):
            blk = c * blocks_per_core + i
            if clamp:
                blk = jnp.minimum(blk, nblocks - 1)
            return (blk, 0)

        in_specs = [pl.BlockSpec((block_rows, _LANES), in_index_map),
                    pl.BlockSpec((block_rows, _LANES), in_index_map)]
        args = [x2, t2]
        if with_mask:
            in_specs.append(pl.BlockSpec((block_rows, _LANES), in_index_map))
            args.append(m2)

        kernel = _make_silog_kernel(with_mask, block_rows, rows,
                                    blocks_per_core, guard)

        in_bytes = sum(int(a.size) * a.dtype.itemsize for a in args)
        cost = pl.CostEstimate(
            flops=10 * n_main,
            transcendentals=2 * n_main,
            bytes_accessed=in_bytes + ncores * nq * _TILE * 4)

        acc = pl.pallas_call(
            kernel,
            out_shape=jax.ShapeDtypeStruct((ncores, nq, _SUBLANES, _LANES),
                                           jnp.float32),
            grid=(ncores, blocks_per_core),
            in_specs=in_specs,
            out_specs=pl.BlockSpec((1, nq, _SUBLANES, _LANES),
                                   lambda c, i: (c, 0, 0, 0)),
            compiler_params=pltpu.CompilerParams(
                dimension_semantics=("parallel", "arbitrary")),
            cost_estimate=cost,
        )(*args)

        sums = jnp.sum(acc, axis=(0, 2, 3))           # (nq,)
        s1 = sums[0] + s1_t
        s2 = sums[1] + s2_t
        count = (sums[2] + cnt_t) if with_mask else jnp.float32(n)

    mean_g = s1 / count
    # torch.var default is unbiased (divides by N - 1).
    var_g = (s2 - s1 * mean_g) / (count - 1.0)
    Dg = var_g + beta * mean_g * mean_g
    return 10.0 * jnp.sqrt(Dg)


def _silog_loss_ref(inp, target, mask=None, beta=0.15):
    """Pure-JAX reference mirroring the PyTorch forward."""
    if inp.ndim == 3:
        inp = inp[:, None]
    if target.ndim == 3:
        target = target[:, None]
    inp = inp.astype(jnp.float32)
    target = jnp.broadcast_to(target.astype(jnp.float32), inp.shape)
    if mask is not None:
        if mask.ndim == 3:
            mask = mask[:, None]
        mask = jnp.broadcast_to(mask, inp.shape)
        inp = inp[mask]
        target = target[mask]
    g = jnp.log(inp + _ALPHA) - jnp.log(target + _ALPHA)
    var_g = jnp.var(g, ddof=1)
    Dg = var_g + beta * jnp.mean(g) ** 2
    return 10.0 * jnp.sqrt(Dg)


if __name__ == "__main__":
    key = jax.random.PRNGKey(0)
    keys = jax.random.split(key, 12)

    def check(pred, gt, msk, name, rtol=1e-4, atol=1e-5):
        loss = jax.block_until_ready(silog_loss(pred, gt, mask=msk, beta=0.15))
        ref = _silog_loss_ref(pred, gt, mask=msk, beta=0.15)
        assert jnp.isfinite(loss), (name, loss)
        assert jnp.allclose(loss, ref, rtol=rtol, atol=atol), (name, loss, ref)

    # 1) Small aligned NCHW input (1024 elems -> single (8,128) block, 1 core).
    B, C, H, W = 2, 1, 16, 32
    pred = jax.random.uniform(keys[0], (B, C, H, W), jnp.float32,
                              minval=0.1, maxval=10.0)
    gt = jax.random.uniform(keys[1], (B, H, W), jnp.float32,
                            minval=0.1, maxval=10.0)
    msk = jax.random.uniform(keys[2], (B, H, W)) > 0.3
    check(pred, gt, None, "small/nomask")
    check(pred, gt, msk, "small/mask")

    # 2) bf16 activations streamed natively (no host cast).
    check(pred.astype(jnp.bfloat16), gt, msk, "small/bf16")

    # 3) Unaligned sizes: pure-JAX tail path and kernel+tail combine path.
    pred3 = jax.random.uniform(keys[3], (1, 1, 20, 30), jnp.float32,
                               minval=0.1, maxval=5.0)          # 600 elems
    gt3 = jax.random.uniform(keys[4], (1, 20, 30), jnp.float32,
                             minval=0.1, maxval=5.0)
    check(pred3, gt3, None, "tiny/tail-only")

    pred4 = jax.random.uniform(keys[5], (1, 1, 40, 40), jnp.float32,
                               minval=0.1, maxval=5.0)          # 1024 + 576
    gt4 = jax.random.uniform(keys[6], (1, 40, 40), jnp.float32,
                             minval=0.1, maxval=5.0)
    msk4 = jax.random.uniform(keys[7], (1, 40, 40)) > 0.25
    check(pred4, gt4, msk4, "mid/kernel+tail")

    # 4) Multi-block case (rows=3072 > 2048) exercising the guarded tail block.
    B2, H2, W2 = 2, 384, 512
    pred2 = jax.random.uniform(keys[8], (B2, 1, H2, W2), jnp.float32,
                               minval=0.05, maxval=20.0)
    gt2 = jax.random.uniform(keys[9], (B2, H2, W2), jnp.float32,
                             minval=0.05, maxval=20.0)
    msk2 = jax.random.uniform(keys[10], (B2, 1, H2, W2)) > 0.25
    check(pred2, gt2, None, "large/nomask")
    check(pred2, gt2, msk2, "large/mask")

    print("KERNEL_OK")
</pallas_src>

<mosaic_0001>
module attributes {stable_mosaic.version = 11 : i64} {
  func.func @kernel(%arg0: i32, %arg1: i32, %arg2: memref<8x128xf32, #tpu.memory_space<vmem>>, %arg3: memref<8x128xf32, #tpu.memory_space<vmem>>, %arg4: memref<1x2x8x128xf32, #tpu.memory_space<vmem>>) attributes {dimension_semantics = [#tpu.dimension_semantics<parallel>, #tpu.dimension_semantics<arbitrary>], iteration_bounds = array<i64: 1, 1>, scalar_prefetch = 0 : i64, scratch_operands = 0 : i64, tpu.core_type = #tpu.core_type<tc>, window_params = [{transform_indices = @transform_0, window_bounds = array<i64: 8, 128>}, {transform_indices = @transform_1, window_bounds = array<i64: 8, 128>}, {transform_indices = @transform_2, window_bounds = array<i64: 1, 2, 8, 128>}]} {
    %c0_i32 = arith.constant 0 : i32
    %0 = arith.cmpi eq, %arg1, %c0_i32 : i32
    %1 = arith.extui %0 : i1 to i32
    %c0_i32_0 = arith.constant 0 : i32
    %2 = arith.cmpi ne, %1, %c0_i32_0 : i32
    scf.if %2 {
      %cst_20 = arith.constant 0.000000e+00 : f32
      %32 = vector.broadcast %cst_20 : f32 to vector<1x2x8x128xf32>
      %c0_21 = arith.constant 0 : index
      %c0_22 = arith.constant 0 : index
      %c0_23 = arith.constant 0 : index
      %c0_24 = arith.constant 0 : index
      %33 = vector.load %arg4[%c0_21, %c0_22, %c0_23, %c0_24] : memref<1x2x8x128xf32, #tpu.memory_space<vmem>>, vector<1x2x8x128xf32>
      tpu.vector_store %arg4[%c0_21, %c0_22, %c0_23, %c0_24], %32 {strides = array<i32>} : memref<1x2x8x128xf32, #tpu.memory_space<vmem>>, vector<1x2x8x128xf32>,
    } else {
    }
    %cst = arith.constant 0.000000e+00 : f32
    %3 = vector.broadcast %cst : f32 to vector<8x128xf32>
    %c0_i32_1 = arith.constant 0 : i32
    %c8_i32 = arith.constant 8 : i32
    %4 = arith.muli %c0_i32_1, %c8_i32 : i32
    %5 = tpu.assume_multiple %4, 8 : i32
    %6 = arith.index_cast %5 : i32 to index
    %c0 = arith.constant 0 : index
    %7 = vector.load %arg2[%6, %c0] : memref<8x128xf32, #tpu.memory_space<vmem>>, vector<8x128xf32>
    %8 = arith.index_cast %5 : i32 to index
    %c0_2 = arith.constant 0 : index
    %9 = vector.load %arg3[%8, %c0_2] : memref<8x128xf32, #tpu.memory_space<vmem>>, vector<8x128xf32>
    %cst_3 = arith.constant 1.000000e-07 : f32
    %10 = vector.broadcast %cst_3 : f32 to vector<8x128xf32>
    %11 = arith.addf %7, %10 : vector<8x128xf32>
    %12 = math.log %11 : vector<8x128xf32>
    %cst_4 = arith.constant 1.000000e-07 : f32
    %13 = vector.broadcast %cst_4 : f32 to vector<8x128xf32>
    %14 = arith.addf %9, %13 : vector<8x128xf32>
    %15 = math.log %14 : vector<8x128xf32>
    %16 = arith.subf %12, %15 : vector<8x128xf32>
    %17 = arith.addf %3, %16 : vector<8x128xf32>
    %18 = arith.mulf %16, %16 : vector<8x128xf32>
    %19 = arith.addf %3, %18 : vector<8x128xf32>
    %c1_i32 = arith.constant 1 : i32
    %c0_5 = arith.constant 0 : index
    %c0_6 = arith.constant 0 : index
    %c0_7 = arith.constant 0 : index
    %c0_8 = arith.constant 0 : index
    %20 = vector.load %arg4[%c0_5, %c0_6, %c0_7, %c0_8] : memref<1x2x8x128xf32, #tpu.memory_space<vmem>>, vector<1x1x8x128xf32>
    %21 = vector.shape_cast %20 : vector<1x1x8x128xf32> to vector<8x128xf32>
    %22 = arith.addf %21, %17 : vector<8x128xf32>
    %c0_9 = arith.constant 0 : index
    %c0_10 = arith.constant 0 : index
    %c0_11 = arith.constant 0 : index
    %c0_12 = arith.constant 0 : index
    %23 = vector.load %arg4[%c0_9, %c0_10, %c0_11, %c0_12] : memref<1x2x8x128xf32, #tpu.memory_space<vmem>>, vector<1x1x8x128xf32>
    %24 = vector.shape_cast %23 : vector<1x1x8x128xf32> to vector<8x128xf32>
    %25 = vector.shape_cast %22 : vector<8x128xf32> to vector<1x1x8x128xf32>
    tpu.vector_store %arg4[%c0_9, %c0_10, %c0_11, %c0_12], %25 {strides = array<i32>} : memref<1x2x8x128xf32, #tpu.memory_space<vmem>>, vector<1x1x8x128xf32>,
    %c0_13 = arith.constant 0 : index
    %c1 = arith.constant 1 : index
    %c0_14 = arith.constant 0 : index
    %c0_15 = arith.constant 0 : index
    %26 = vector.load %arg4[%c0_13, %c1, %c0_14, %c0_15] : memref<1x2x8x128xf32, #tpu.memory_space<vmem>>, vector<1x1x8x128xf32>
    %27 = vector.shape_cast %26 : vector<1x1x8x128xf32> to vector<8x128xf32>
    %28 = arith.addf %27, %19 : vector<8x128xf32>
    %c0_16 = arith.constant 0 : index
    %c1_17 = arith.constant 1 : index
    %c0_18 = arith.constant 0 : index
    %c0_19 = arith.constant 0 : index
    %29 = vector.load %arg4[%c0_16, %c1_17, %c0_18, %c0_19] : memref<1x2x8x128xf32, #tpu.memory_space<vmem>>, vector<1x1x8x128xf32>
    %30 = vector.shape_cast %29 : vector<1x1x8x128xf32> to vector<8x128xf32>
    %31 = vector.shape_cast %28 : vector<8x128xf32> to vector<1x1x8x128xf32>
    tpu.vector_store %arg4[%c0_16, %c1_17, %c0_18, %c0_19], %31 {strides = array<i32>} : memref<1x2x8x128xf32, #tpu.memory_space<vmem>>, vector<1x1x8x128xf32>,
    return
  }
  func.func @transform_0(%arg0: i32, %arg1: i32) -> (i32, i32) {
    %c1_i32 = arith.constant 1 : i32
    %0 = arith.muli %arg0, %c1_i32 : i32
    %1 = arith.addi %0, %arg1 : i32
    %c0_i32 = arith.constant 0 : i32
    %c0_i32_0 = arith.constant 0 : i32
    return %1, %c0_i32 : i32, i32
  }
  func.func @transform_1(%arg0: i32, %arg1: i32) -> (i32, i32) {
    %c1_i32 = arith.constant 1 : i32
    %0 = arith.muli %arg0, %c1_i32 : i32
    %1 = arith.addi %0, %arg1 : i32
    %c0_i32 = arith.constant 0 : i32
    %c0_i32_0 = arith.constant 0 : i32
    return %1, %c0_i32 : i32, i32
  }
  func.func @transform_2(%arg0: i32, %arg1: i32) -> (i32, i32, i32, i32) {
    %c0_i32 = arith.constant 0 : i32
    %c0_i32_0 = arith.constant 0 : i32
    %c0_i32_1 = arith.constant 0 : i32
    %c0_i32_2 = arith.constant 0 : i32
    return %arg0, %c0_i32, %c0_i32_0, %c0_i32_1 : i32, i32, i32, i32
  }
}

</mosaic_0001>

<llo_original>
// kernel: tpu_custom_call.1
$region0: #{tpu_custom_call.1}
  #allocation0 [shape = 'u32[]', space=smem, size = 0x4, offset = 0x4, fixed_abs, tag = 'smem constant byte address 0x4 - core index']
  #allocation1 [shape = 'u32[72,128]{1,0:T(1,128)}', space=vmem, size = 0x9000, scoped, tag = 'internal scratch']
  %s0 = inlined_call_operand.hbm [shape: f32[8,128], index: 0, kind: input, shape index: {}]
  %s1 = inlined_call_operand.hbm [shape: f32[8,128], index: 1, kind: input, shape index: {}]
  %s2 = inlined_call_operand.hbm [shape: f32[1,2,8,128], index: 2, kind: output, shape index: {}]
  %s3 = sld [smem:[#allocation0]]
  $region30: #{tpu_custom_call.1} parent=0
    _
  %s5 = ssub.s32 1, %s3
  %s6 = scalar_select 0, %s5, %s3
  $region1: #{tpu_custom_call.1} parent=0
    #allocation2 [shape = 'u8[4096]{0}', space=vmem, size = 0x1000, scoped, tag = 'input window, operand 0, single buffered']
    #allocation3 [shape = 's32[1]{0}', space=sflag, size = 0x4, scoped, tag = 'scoped memory for tpu_custom_call.1']
    #allocation4 [shape = 's32[1]{0}', space=sflag, size = 0x4, scoped, tag = 'scoped memory for tpu_custom_call.1']
    #allocation5 [shape = 'u8[4096]{0}', space=vmem, size = 0x1000, scoped, tag = 'input window, operand 1, single buffered']
    #allocation6 [shape = 's32[1]{0}', space=sflag, size = 0x4, scoped, tag = 'scoped memory for tpu_custom_call.1']
    #allocation7 [shape = 'u8[8192]{0}', space=vmem, size = 0x2000, scoped, tag = 'output window, operand 0, single buffered']
    %7 = vsyncpa [#allocation3], 0
    %8 = vsyncpa [#allocation6], 0
    %9 = vsyncpa [#allocation4], 0
    // Predicated region
    $region2: #{tpu_custom_call.1} parent=1 // pred_check
      _
    $region3: #{tpu_custom_call.1} parent=1 // pred_check_branch
      %11 = sbr.rel (0) target = $region5
    $region4: #{tpu_custom_call.1} parent=1 // pred_region
      %s12 = sadd.s32 0, 0
      %14 = vsyncadd [#allocation3], 0
      %s15 = smul.addr %s12, 8
      %s16 = scalar_lea.hbm %s0, %s15
      %s18 = sshll.u32 %s16, 4
      %s19 = int_to_ptr.hbm [resolvable:$true] %s18
      %s20 = sshll.u32 [#allocation2], 4
      %s21 = int_to_ptr.vmem [resolvable:$true] %s20
      %23 = dma.hbm_to_vmem [thread:$0]  %s19, 128, %s21, [#allocation3]
    $region5: #{tpu_custom_call.1} parent=1 // pred_fallthru
      _
    // Predicated region
    $region6: #{tpu_custom_call.1} parent=1 // pred_check
      _
    $region7: #{tpu_custom_call.1} parent=1 // pred_check_branch
      %25 = sbr.rel (0) target = $region9
    $region8: #{tpu_custom_call.1} parent=1 // pred_region
      %s26 = sadd.s32 0, 0
      %28 = vsyncadd [#allocation6], 0
      %s29 = smul.addr %s26, 8
      %s30 = scalar_lea.hbm %s1, %s29
      %s32 = sshll.u32 %s30, 4
      %s33 = int_to_ptr.hbm [resolvable:$true] %s32
      %s34 = sshll.u32 [#allocation5], 4
      %s35 = int_to_ptr.vmem [resolvable:$true] %s34
      %37 = dma.hbm_to_vmem [thread:$0]  %s33, 128, %s35, [#allocation6]
    $region9: #{tpu_custom_call.1} parent=1 // pred_fallthru
      _
    // Predicated region
    $region10: #{tpu_custom_call.1} parent=1 // pred_check
      _
    $region11: #{tpu_custom_call.1} parent=1 // pred_check_branch
      %39 = sbr.rel (0) target = $region13
    $region12: #{tpu_custom_call.1} parent=1 // pred_region
      %41 = dma.done [#allocation3], 128
    $region13: #{tpu_custom_call.1} parent=1 // pred_fallthru
      _
    // Predicated region
    $region14: #{tpu_custom_call.1} parent=1 // pred_check
      _
    $region15: #{tpu_custom_call.1} parent=1 // pred_check_branch
      %43 = sbr.rel (0) target = $region17
    $region16: #{tpu_custom_call.1} parent=1 // pred_region
      %45 = dma.done [#allocation6], 128
    $region17: #{tpu_custom_call.1} parent=1 // pred_fallthru
      _
    %s46 = sadd.s32 0, 0
    %s47 = sadd.s32 0, 0
    %p48 = scmp.eq.s32.totalorder 0, 0
    // Predicated region
    $region18: #{tpu_custom_call.1} parent=1 // pred_check
      %p49 = pneg %p48
    $region19: #{tpu_custom_call.1} parent=1 // pred_check_branch
      %51 = sbr.rel (%p49) target = $region21
    $region20: #{tpu_custom_call.1} parent=1 // pred_region
      %52 = vst [vmem:[#allocation7] sm:$0xff] 0.0
      %53 = vst [vmem:[#allocation7 + $0x8] sm:$0xff] 0.0
    $region21: #{tpu_custom_call.1} parent=1 // pred_fallthru
      _
    %v54 = vld [vmem:[#allocation2] sm:$0xff]
    %v55 = vld [vmem:[#allocation5] sm:$0xff]
    %v56 = vadd.f32 %v54, 1e-07
    %v57 = vlog2.pop %v56
    %v58 = vmul.f32 %v57, 0.6931472
    %v59 = vadd.f32 %v55, 1e-07
    %v60 = vlog2.pop %v59
    %v61 = vmul.f32 %v60, 0.6931472
    %v62 = vsub.f32 %v58, %v61
    %v63 = vadd.f32 %v62, 0.0
    %v64 = vmul.f32 %v62, %v62
    %v65 = vadd.f32 %v64, 0.0
    %v66 = vld [vmem:[#allocation7] sm:$0xff]
    %v67 = vadd.f32 %v66, %v63
    %68 = vst [vmem:[#allocation7] sm:$0xff] %v67
    %s69 = scalar_lea.vmem [#allocation7], 8
    %v70 = vld [vmem:[%s69] sm:$0xff]
    %v71 = vadd.f32 %v70, %v65
    %72 = vst [vmem:[%s69] sm:$0xff] %v71
    // Predicated region
    $region22: #{tpu_custom_call.1} parent=1 // pred_check
      _
    $region23: #{tpu_custom_call.1} parent=1 // pred_check_branch
      %74 = sbr.rel (0) target = $region25
    $region24: #{tpu_custom_call.1} parent=1 // pred_region
      %76 = vsyncadd [#allocation4], 0
      %s77 = sshll.u32 [#allocation7], 4
      %s78 = int_to_ptr.vmem [resolvable:$true] %s77
      %s79 = sshll.u32 %s2, 4
      %s80 = int_to_ptr.hbm [resolvable:$true] %s79
      %85 = dma.vmem_to_hbm [thread:$0]  %s78, 256, %s80, [#allocation4], 128, 128, 8
    $region25: #{tpu_custom_call.1} parent=1 // pred_fallthru
      _
    // Predicated region
    $region26: #{tpu_custom_call.1} parent=1 // pred_check
      _
    $region27: #{tpu_custom_call.1} parent=1 // pred_check_branch
      %87 = sbr.rel (0) target = $region29
    $region28: #{tpu_custom_call.1} parent=1 // pred_region
      %89 = dma.done [#allocation4], 256
    $region29: #{tpu_custom_call.1} parent=1 // pred_fallthru
      _
    %90 = vsyncpa [#allocation3], 1
    %91 = vsyncpa [#allocation6], 1
    %92 = vsyncpa [#allocation4], 1

</llo_original>
